<compile_context>
chip_gen: v7x
topology: tpu7x:2x2x1
jax: 0.10.0
libtpu: 0.0.40
codegen_flags: <defaults>
</compile_context>

<pallas_src>
import functools

import jax
import jax.numpy as jnp
from jax.experimental import pallas as pl
from jax.experimental.pallas import tpu as pltpu


def _drop_path_kernel(keep_ref, x_ref, o_ref, *, inv_keep_prob):
    """One (1, R, C) tile: out = x * (1/keep_prob) if kept, else zeros.

    keep_ref : [B] int32 in SMEM (scalar prefetch), 1 => keep, 0 => drop.
    x_ref / o_ref : (1, R, C) VMEM tiles of the (B, rows, C) slab.
    """
    b = pl.program_id(0)

    @pl.when(keep_ref[b] == 0)
    def _dropped():
        o_ref[...] = jnp.zeros_like(o_ref)

    @pl.when(keep_ref[b] != 0)
    def _kept():
        o_ref[...] = x_ref[...] * jnp.asarray(inv_keep_prob, o_ref.dtype)


# Lane widths to try (largest first); all multiples of 128.
_C_CANDIDATES = (1024, 896, 768, 640, 512, 384, 256, 128)
_PAD_C = 512                      # fallback lane width when padding is needed
# ~2 MiB per block: >=85%-of-roofline DMA chunks on v5e/v6e, and the
# 2x(in+out) double-buffered footprint (~8 MiB) fits every default scoped
# VMEM limit.  On v7x this could be raised to 4-8 MiB with vmem_limit_bytes.
_TARGET_BLOCK_BYTES = 2 * 1024 * 1024


def drop_path(x, drop_prob, *, training, key=None):
    """Pallas DropPath.  x: [B, ...]; drops whole samples along axis 0."""
    if (drop_prob is None) or (float(drop_prob) == 0.0) or (not training):
        return x
    drop_prob = float(drop_prob)
    if drop_prob >= 1.0:
        # keep_prob == 0: every sample is dropped; avoid the 0 * inf NaN.
        return jnp.zeros_like(x)
    if key is None:
        raise ValueError("drop_path: a PRNG key is required in training mode")

    keep_prob = 1.0 - drop_prob
    orig_shape = x.shape
    B = orig_shape[0]
    F = 1
    for d in orig_shape[1:]:
        F *= d

    # Per-sample Bernoulli keep mask, hoisted out of the kernel.
    # floor(keep_prob + U[0,1)) == 1 with probability keep_prob.
    u = jax.random.uniform(key, (B,), dtype=jnp.float32)
    keep = jnp.floor(keep_prob + u).astype(jnp.int32)

    # ---- Sublane-dense (rows, C) factorization of the feature axis -------
    itemsize = x.dtype.itemsize
    C = None
    for cand in _C_CANDIDATES:
        if F % cand == 0:
            C = cand
            break
    if C is None:
        C = _PAD_C
        Fp = ((F + C - 1) // C) * C          # pad, then slice after the call
    else:
        Fp = F

    x2 = x.reshape(B, F)
    if Fp != F:
        x2 = jnp.pad(x2, ((0, 0), (0, Fp - F)))
    rows = Fp // C
    x3 = x2.reshape(B, rows, C)

    # ---- Byte-based block sizing, sublane-aligned -------------------------
    sub = max(1, 32 // itemsize)             # 8 (f32), 16 (bf16), 32 (int8)
    r_block = max(sub, _TARGET_BLOCK_BYTES // (C * itemsize))
    r_block = (r_block // sub) * sub
    r_block = min(r_block, rows)             # full extent is always legal
    grid = (B, pl.cdiv(rows, r_block))

    kernel = functools.partial(_drop_path_kernel, inv_keep_prob=1.0 / keep_prob)

    out = pl.pallas_call(
        kernel,
        out_shape=jax.ShapeDtypeStruct((B, rows, C), x.dtype),
        grid_spec=pltpu.PrefetchScalarGridSpec(
            num_scalar_prefetch=1,           # keep mask -> SMEM
            grid=grid,
            in_specs=[
                # Dropped samples collapse every row-tile to block 0, so the
                # pipeline fetches their input once instead of once per tile
                # (the kernel never reads it — it writes zeros directly).
                pl.BlockSpec((1, r_block, C),
                             lambda b, t, keep: (b, t * keep[b], 0)),
            ],
            out_specs=pl.BlockSpec((1, r_block, C),
                                   lambda b, t, keep: (b, t, 0)),
        ),
        compiler_params=pltpu.CompilerParams(
            # TODO(synk): on v7x, pltpu.CORE_PARALLEL on the larger axis would
            # make dual-TensorCore sharding explicit; kept portable here.
            dimension_semantics=("parallel", "parallel"),
        ),
        cost_estimate=pl.CostEstimate(
            flops=B * Fp,
            transcendentals=0,
            bytes_accessed=2 * B * Fp * itemsize,
        ),
    )(keep, x3)

    out = out.reshape(B, Fp)
    if Fp != F:
        out = out[:, :F]
    return out.reshape(orig_shape)


class DropPath:
    """JAX/Pallas mirror of the PyTorch DropPath module (forward only)."""

    def __init__(self, drop_prob=None):
        self.drop_prob = drop_prob
        self.training = True

    def __call__(self, x, key=None):
        return drop_path(x, self.drop_prob, training=self.training, key=key)


if __name__ == "__main__":
    root = jax.random.PRNGKey(0)
    kx, kx2, kd = jax.random.split(root, 3)

    B, N, D = 2, 8, 32                       # batch, tokens, hidden
    x = jax.random.normal(kx, (B, N, D), dtype=jnp.float32)

    module = DropPath(drop_prob=0.3)
    keep_prob = 1.0 - 0.3

    # Training mode: per-sample stochastic drop + 1/keep_prob rescale.
    y_train = jax.block_until_ready(module(x, key=kd))
    for b in range(B):
        row = y_train[b]
        is_zero = bool(jnp.all(row == 0.0))
        is_scaled = bool(jnp.allclose(row, x[b] / keep_prob,
                                      rtol=1e-5, atol=1e-6))
        assert is_zero or is_scaled, "per-sample drop-path semantics violated"

    # Non-128-multiple feature size exercises the pad-and-slice path.
    x_odd = jax.random.normal(kx2, (B, 5, 20), dtype=jnp.float32)
    y_odd = jax.block_until_ready(module(x_odd, key=kd))
    for b in range(B):
        row = y_odd[b]
        is_zero = bool(jnp.all(row == 0.0))
        is_scaled = bool(jnp.allclose(row, x_odd[b] / keep_prob,
                                      rtol=1e-5, atol=1e-6))
        assert is_zero or is_scaled, "padded-path drop-path semantics violated"

    # Eval mode: identity.
    module.training = False
    y_eval = jax.block_until_ready(module(x))
    assert bool(jnp.allclose(y_eval, x))

    print("KERNEL_OK")
</pallas_src>

<mosaic_0001>
module attributes {stable_mosaic.version = 11 : i64} {
  func.func @_drop_path_kernel(%arg0: i32, %arg1: i32, %arg2: memref<2xi32, #tpu.memory_space<smem>>, %arg3: memref<1x1x256xf32, #tpu.memory_space<vmem>>, %arg4: memref<1x1x256xf32, #tpu.memory_space<vmem>>) attributes {dimension_semantics = [#tpu.dimension_semantics<parallel>, #tpu.dimension_semantics<parallel>], iteration_bounds = array<i64: 2, 1>, scalar_prefetch = 1 : i64, scratch_operands = 0 : i64, tpu.core_type = #tpu.core_type<tc>, window_params = [{transform_indices = @transform_0, window_bounds = array<i64: 1, 1, 256>}, {transform_indices = @transform_1, window_bounds = array<i64: 1, 1, 256>}]} {
    %0 = arith.index_cast %arg0 : i32 to index
    %1 = memref.load %arg2[%0] : memref<2xi32, #tpu.memory_space<smem>>
    %c0_i32 = arith.constant 0 : i32
    %2 = arith.cmpi eq, %1, %c0_i32 : i32
    %3 = arith.extui %2 : i1 to i32
    %c0_i32_0 = arith.constant 0 : i32
    %4 = arith.cmpi ne, %3, %c0_i32_0 : i32
    scf.if %4 {
      %cst = arith.constant 0.000000e+00 : f32
      %10 = vector.broadcast %cst : f32 to vector<1x1x256xf32>
      %c0 = arith.constant 0 : index
      %c0_3 = arith.constant 0 : index
      %c0_4 = arith.constant 0 : index
      %11 = vector.load %arg4[%c0, %c0_3, %c0_4] : memref<1x1x256xf32, #tpu.memory_space<vmem>>, vector<1x1x256xf32>
      tpu.vector_store %arg4[%c0, %c0_3, %c0_4], %10 {strides = array<i32>} : memref<1x1x256xf32, #tpu.memory_space<vmem>>, vector<1x1x256xf32>,
    } else {
    }
    %5 = arith.index_cast %arg0 : i32 to index
    %6 = memref.load %arg2[%5] : memref<2xi32, #tpu.memory_space<smem>>
    %c0_i32_1 = arith.constant 0 : i32
    %7 = arith.cmpi ne, %6, %c0_i32_1 : i32
    %8 = arith.extui %7 : i1 to i32
    %c0_i32_2 = arith.constant 0 : i32
    %9 = arith.cmpi ne, %8, %c0_i32_2 : i32
    scf.if %9 {
      %c0 = arith.constant 0 : index
      %c0_3 = arith.constant 0 : index
      %c0_4 = arith.constant 0 : index
      %10 = vector.load %arg3[%c0, %c0_3, %c0_4] : memref<1x1x256xf32, #tpu.memory_space<vmem>>, vector<1x1x256xf32>
      %cst = arith.constant 1.42857146 : f32
      %11 = vector.broadcast %cst : f32 to vector<1x1x256xf32>
      %12 = arith.mulf %10, %11 : vector<1x1x256xf32>
      %c0_5 = arith.constant 0 : index
      %c0_6 = arith.constant 0 : index
      %c0_7 = arith.constant 0 : index
      %13 = vector.load %arg4[%c0_5, %c0_6, %c0_7] : memref<1x1x256xf32, #tpu.memory_space<vmem>>, vector<1x1x256xf32>
      tpu.vector_store %arg4[%c0_5, %c0_6, %c0_7], %12 {strides = array<i32>} : memref<1x1x256xf32, #tpu.memory_space<vmem>>, vector<1x1x256xf32>,
    } else {
    }
    return
  }
  func.func @transform_0(%arg0: i32, %arg1: i32, %arg2: memref<2xi32, #tpu.memory_space<smem>>) -> (i32, i32, i32) {
    %0 = arith.index_cast %arg0 : i32 to index
    %1 = memref.load %arg2[%0] : memref<2xi32, #tpu.memory_space<smem>>
    %2 = arith.muli %arg1, %1 : i32
    %c0_i32 = arith.constant 0 : i32
    %c0_i32_0 = arith.constant 0 : i32
    return %arg0, %2, %c0_i32 : i32, i32, i32
  }
  func.func @transform_1(%arg0: i32, %arg1: i32, %arg2: memref<2xi32, #tpu.memory_space<smem>>) -> (i32, i32, i32) {
    %c0_i32 = arith.constant 0 : i32
    %c0_i32_0 = arith.constant 0 : i32
    return %arg0, %arg1, %c0_i32 : i32, i32, i32
  }
}

</mosaic_0001>

<llo_original>
// kernel: tpu_custom_call.1
$region0: #{tpu_custom_call.1}
  #allocation0 [shape = 'u32[]', space=smem, size = 0x4, offset = 0x4, fixed_abs, tag = 'smem constant byte address 0x4 - core index']
  #allocation1 [shape = 'u32[144,128]{1,0:T(1,128)}', space=vmem, size = 0x12000, scoped, tag = 'internal scratch']
  #allocation2 [shape = 's32[1]{0}', space=sflag, size = 0x4, scoped, tag = 'scoped memory for tpu_custom_call.1']
  #allocation3 [shape = 'u8[512]{0}', space=smem, size = 0x200, scoped, tag = 'prefetched SMEM operand 0']
  %s0 = inlined_call_operand.hbm [shape: s32[2], index: 0, kind: input, shape index: {}]
  %s1 = inlined_call_operand.hbm [shape: f32[2,1,256], index: 1, kind: input, shape index: {}]
  %s2 = inlined_call_operand.hbm [shape: f32[2,1,256], index: 2, kind: output, shape index: {}]
  %s3 = sld [smem:[#allocation0]]
  $region49: #{tpu_custom_call.1} parent=0
    _
  %s5 = ssub.s32 1, %s3
  %s6 = scalar_select 0, %s5, %s3
  %8 = dma.hbm_to_smem %s0, 16, [#allocation3], [#allocation2]
  %9 = dma.done [#allocation2], 16
  %10 = sfence
  $region1: #{tpu_custom_call.1} parent=0
    #allocation4 [shape = 'u8[2048]{0}', space=vmem, size = 0x800, scoped, tag = 'input window, operand 1']
    #allocation5 [shape = 's32[2]{0}', space=sflag, size = 0x8, scoped, tag = 'scoped memory for tpu_custom_call.1']
    #allocation6 [shape = 's32[2]{0}', space=sflag, size = 0x8, scoped, tag = 'scoped memory for tpu_custom_call.1']
    #allocation7 [shape = 'u8[2048]{0}', space=vmem, size = 0x800, scoped, tag = 'output window, operand 0']
    %11 = vsyncpa [#allocation5], 0
    %s12 = scalar_lea.sflag [#allocation5], 1
    %13 = vsyncpa %s12, 0
    %14 = vsyncpa [#allocation6], 0
    %s15 = scalar_lea.sflag [#allocation6], 1
    %16 = vsyncpa %s15, 0
    loop: start=0, step=1, limit=4
    $region2: #{tpu_custom_call.1} parent=1 // loop_pre_header
      _
    $region3: #{tpu_custom_call.1} parent=1 // loop_header
      %s18 = sphi 0, %s22
      %p19 = scmp.ge.s32.totalorder %s18, 4
      %s25 = sphi 0, %s37
      %s26 = sphi 0, %s33
      %s27 = sphi 0, %s25
      %s28 = sphi 0, %s26
      %s29 = sphi 0, %s27
      %s30 = sphi 0, %s28
      %s46 = sphi 0, %s48
      %s49 = sphi 0, %s46
      %s50 = sphi 0, %s49
      %s66 = sphi 0, %s50
      %s74 = sphi 0, %s76
      %s77 = sphi 0, %s74
      %s78 = sphi 0, %s77
      %s94 = sphi 0, %s78
    $region4: #{tpu_custom_call.1} parent=1 // loop_header_branch
      %21 = sbr.rel (%p19) target = $region8
    $region5: #{tpu_custom_call.1} parent=1 // loop_body
      %s23 = ssub.s32 %s18, 1
      %s24 = ssub.s32 %s18, 2
      %s31 = sadd.s32 1, %s26
      %p32 = scmp.ge.s32.totalorder %s31, 1
      %s33 = scalar_select %p32, 0, %s31
      %s34 = sadd.s32 1, %s25
      %s35 = scalar_select %p32, %s34, %s25
      %p36 = scmp.ge.s32.totalorder %s35, 2
      %s37 = scalar_select %p36, 0, %s35
      %s38 = sld [smem:[#allocation3 + %s25]]
      %s39 = smul.u32 %s26, %s38
      %s40 = sld [smem:[#allocation3 + %s37]]
      %s41 = smul.u32 %s33, %s40
      %s42 = ssub.s32 %s25, %s37
      %s43 = ssub.s32 %s39, %s41
      %s44 = sor.u32 %s42, %s43
      %p45 = scmp.eq.s32.totalorder %s44, 0
      %s47 = sadd.s32 %s46, 1
      %s48 = scalar_select %p45, %s46, %s47
      %p51 = pneg %p45
      %p52 = scmp.eq.s32.totalorder %s18, 1
      %p53 = por %p51, %p52
      %p54 = scmp.ne.s32.totalorder %s46, %s49
      %p55 = scmp.eq.s32.totalorder %s18, 0
      %p56 = por %p54, %p55
      %p57 = scmp.ne.s32.totalorder %s46, %s49
      %p58 = scmp.eq.s32.totalorder %s23, 1
      %p59 = por %p57, %p58
      %p60 = scmp.ne.s32.totalorder %s49, %s50
      %p61 = scmp.eq.s32.totalorder %s23, 0
      %p62 = por %p60, %p61
      %p63 = scmp.ne.s32.totalorder %s49, %s50
      %p64 = scmp.eq.s32.totalorder %s24, 1
      %p65 = por %p63, %p64
      %p67 = scmp.ne.s32.totalorder %s50, %s66
      %p68 = scmp.eq.s32.totalorder %s24, 0
      %p69 = por %p67, %p68
      %s70 = ssub.s32 %s25, %s37
      %s71 = ssub.s32 %s26, %s33
      %s72 = sor.u32 %s70, %s71
      %p73 = scmp.eq.s32.totalorder %s72, 0
      %s75 = sadd.s32 %s74, 1
      %s76 = scalar_select %p73, %s74, %s75
      %p79 = pneg %p73
      %p80 = scmp.eq.s32.totalorder %s18, 1
      %p81 = por %p79, %p80
      %p82 = scmp.ne.s32.totalorder %s74, %s77
      %p83 = scmp.eq.s32.totalorder %s18, 0
      %p84 = por %p82, %p83
      %p85 = scmp.ne.s32.totalorder %s74, %s77
      %p86 = scmp.eq.s32.totalorder %s23, 1
      %p87 = por %p85, %p86
      %p88 = scmp.ne.s32.totalorder %s77, %s78
      %p89 = scmp.eq.s32.totalorder %s23, 0
      %p90 = por %p88, %p89
      %p91 = scmp.ne.s32.totalorder %s77, %s78
      %p92 = scmp.eq.s32.totalorder %s24, 1
      %p93 = por %p91, %p92
      %p95 = scmp.ne.s32.totalorder %s78, %s94
      %p96 = scmp.eq.s32.totalorder %s24, 0
      %p97 = por %p95, %p96
      %p98 = scmp.le.s32.totalorder 1, %s18
      %p99 = scmp.lt.s32.totalorder %s18, 3
      %p100 = pnand %p98, %p99
      %p101 = pneg %p100
      // Predicated region
      $region9: #{tpu_custom_call.1} parent=5 // pred_check
        _
      $region10: #{tpu_custom_call.1} parent=5 // pred_check_branch
        %103 = sbr.rel (%p100) target = $region12
      $region11: #{tpu_custom_call.1} parent=5 // pred_region
        %s104 = ssub.s32 %s18, 1
      $region12: #{tpu_custom_call.1} parent=5 // pred_fallthru
        _
      %p105 = scmp.lt.s32.totalorder %s18, 2
      // Predicated region
      $region13: #{tpu_custom_call.1} parent=5 // pred_check
        %p106 = pneg %p105
      $region14: #{tpu_custom_call.1} parent=5 // pred_check_branch
        %108 = sbr.rel (%p106) target = $region16
      $region15: #{tpu_custom_call.1} parent=5 // pred_region
        // Predicated region
        $region17: #{tpu_custom_call.1} parent=15 // pred_check
          %p109 = pneg %p56
        $region18: #{tpu_custom_call.1} parent=15 // pred_check_branch
          %111 = sbr.rel (%p109) target = $region20
        $region19: #{tpu_custom_call.1} parent=15 // pred_region
          %s112 = sand.u32 %s46, 1
          %s113 = scalar_lea.sflag [#allocation5], %s112
          %s114 = sand.u32 %s46, 1
          %s115 = smul.addr %s114, 2
          %s116 = scalar_lea.vmem [#allocation4], %s115
          %s117 = sld [smem:[#allocation3 + %s25]]
          %s118 = smul.u32 %s26, %s117
          %s120 = ssub.s32 32, 32
          %121 = vsyncadd %s113, %s120
          %s122 = smul.addr %s118, 2
          %s123 = smul.addr %s25, 2
          %s124 = sadd.s32 %s122, %s123
          %s125 = smul.addr %s124, 16
          %s126 = scalar_lea.hbm %s1, %s125
          %s128 = sshll.u32 %s116, 4
          %s129 = int_to_ptr.vmem [resolvable:$true] %s128
          %131 = dma.hbm_to_vmem [thread:$0]  %s126, 32, %s129, %s113
        $region20: #{tpu_custom_call.1} parent=15 // pred_fallthru
          _
      $region16: #{tpu_custom_call.1} parent=5 // pred_fallthru
        _
      %p132 = scmp.le.s32.totalorder 1, %s18
      %p133 = scmp.lt.s32.totalorder %s18, 3
      %p134 = pnand %p132, %p133
      %p135 = pneg %p134
      // Predicated region
      $region21: #{tpu_custom_call.1} parent=5 // pred_check
        _
      $region22: #{tpu_custom_call.1} parent=5 // pred_check_branch
        %137 = sbr.rel (%p134) target = $region24
      $region23: #{tpu_custom_call.1} parent=5 // pred_region
        %s138 = ssub.s32 %s18, 1
        %s139 = sand.u32 %s49, 1
        %s140 = scalar_lea.sflag [#allocation5], %s139
        %s141 = sand.u32 %s49, 1
        %s142 = smul.addr %s141, 2
        %s143 = scalar_lea.vmem [#allocation4], %s142
        // Predicated region
        $region25: #{tpu_custom_call.1} parent=23 // pred_check
          %p144 = pneg %p62
        $region26: #{tpu_custom_call.1} parent=23 // pred_check_branch
          %146 = sbr.rel (%p144) target = $region28
        $region27: #{tpu_custom_call.1} parent=23 // pred_region
          %147 = dma.done %s140, 32
        $region28: #{tpu_custom_call.1} parent=23 // pred_fallthru
          _
        %s148 = sand.u32 %s49, 1
        %s149 = scalar_lea.sflag [#allocation5], %s148
        %s150 = sand.u32 %s49, 1
        %s151 = smul.addr %s150, 2
        %s152 = scalar_lea.vmem [#allocation4], %s151
        %p153 = pneg %p62
        %p154 = pneg %p59
        %p155 = pneg %p90
        %p156 = pneg %p87
        %s157 = sand.u32 %s77, 1
        %s158 = scalar_lea.sflag [#allocation6], %s157
        %s159 = sand.u32 %s77, 1
        %s160 = smul.addr %s159, 2
        %s161 = scalar_lea.vmem [#allocation7], %s160
        %s162 = sld [smem:[#allocation3 + %s27]]
        %s163 = smul.u32 %s28, %s162
        %s164 = sld [smem:[#allocation3 + %s27]]
        %p165 = scmp.eq.s32.totalorder %s164, 0
        // Predicated region
        $region29: #{tpu_custom_call.1} parent=23 // pred_check
          %p166 = pneg %p165
        $region30: #{tpu_custom_call.1} parent=23 // pred_check_branch
          %168 = sbr.rel (%p166) target = $region32
        $region31: #{tpu_custom_call.1} parent=23 // pred_region
          %v169 = vlaneseq
          %vm170 = vcmp.ge.s32.totalorder %v169, 0
          %vm171 = vcmp.lt.s32.totalorder %v169, 256
          %vm172 = vmand %vm170, %vm171
          %173 = vst.msk [vmem:[%s161] sm:$0x3] %vm172, 0.0
        $region32: #{tpu_custom_call.1} parent=23 // pred_fallthru
          _
        %s174 = sld [smem:[#allocation3 + %s27]]
        %p175 = scmp.ne.s32.totalorder %s174, 0
        // Predicated region
        $region33: #{tpu_custom_call.1} parent=23 // pred_check
          %p176 = pneg %p175
        $region34: #{tpu_custom_call.1} parent=23 // pred_check_branch
          %178 = sbr.rel (%p176) target = $region36
        $region35: #{tpu_custom_call.1} parent=23 // pred_region
          %v179 = vld [vmem:[%s143] sm:$0x3]
          %v180 = vmul.f32 %v179, 1.4285715
          %v181 = vlaneseq
          %vm182 = vcmp.ge.s32.totalorder %v181, 0
          %vm183 = vcmp.lt.s32.totalorder %v181, 256
          %vm184 = vmand %vm182, %vm183
          %185 = vst.msk [vmem:[%s161] sm:$0x3] %vm184, %v180
        $region36: #{tpu_custom_call.1} parent=23 // pred_fallthru
          _
        %s186 = sand.u32 %s77, 1
        %s187 = scalar_lea.sflag [#allocation6], %s186
        %s188 = sand.u32 %s77, 1
        %s189 = smul.addr %s188, 2
        %s190 = scalar_lea.vmem [#allocation7], %s189
        // Predicated region
        $region37: #{tpu_custom_call.1} parent=23 // pred_check
          %p191 = pneg %p87
        $region38: #{tpu_custom_call.1} parent=23 // pred_check_branch
          %193 = sbr.rel (%p191) target = $region40
        $region39: #{tpu_custom_call.1} parent=23 // pred_region
          %s195 = ssub.s32 32, 32
          %196 = vsyncadd %s187, %s195
          %s197 = smul.addr %s28, 2
          %s198 = smul.addr %s27, 2
          %s199 = sadd.s32 %s197, %s198
          %s200 = smul.addr %s199, 16
          %s201 = scalar_lea.hbm %s2, %s200
          %s203 = sshll.u32 %s190, 4
          %s204 = int_to_ptr.vmem [resolvable:$true] %s203
          %206 = dma.vmem_to_hbm [thread:$0]  %s204, 32, %s201, %s187
        $region40: #{tpu_custom_call.1} parent=23 // pred_fallthru
          _
      $region24: #{tpu_custom_call.1} parent=5 // pred_fallthru
        _
      %p207 = scmp.le.s32.totalorder 2, %s18
      // Predicated region
      $region41: #{tpu_custom_call.1} parent=5 // pred_check
        %p208 = pneg %p207
      $region42: #{tpu_custom_call.1} parent=5 // pred_check_branch
        %210 = sbr.rel (%p208) target = $region44
      $region43: #{tpu_custom_call.1} parent=5 // pred_region
        %s211 = ssub.s32 %s18, 2
        // Predicated region
        $region45: #{tpu_custom_call.1} parent=43 // pred_check
          %p212 = pneg %p93
        $region46: #{tpu_custom_call.1} parent=43 // pred_check_branch
          %214 = sbr.rel (%p212) target = $region48
        $region47: #{tpu_custom_call.1} parent=43 // pred_region
          %s215 = sand.u32 %s78, 1
          %s216 = scalar_lea.sflag [#allocation6], %s215
          %s217 = sand.u32 %s78, 1
          %s218 = smul.addr %s217, 2
          %s219 = scalar_lea.vmem [#allocation7], %s218
          %220 = dma.done %s216, 32
        $region48: #{tpu_custom_call.1} parent=43 // pred_fallthru
          _
      $region44: #{tpu_custom_call.1} parent=5 // pred_fallthru
        _
    $region6: #{tpu_custom_call.1} parent=1 // loop_footer
      %s22 = sadd.s32 1, %s18
    $region7: #{tpu_custom_call.1} parent=1 // loop_footer_branch
      %17 = sbr.rel target = $region3
    $region8: #{tpu_custom_call.1} parent=1 // loop_exit
      _
    %221 = vsyncpa [#allocation5], 1
    %s222 = scalar_lea.sflag [#allocation5], 1
    %223 = vsyncpa %s222, 1
    %224 = vsyncpa [#allocation6], 1
    %s225 = scalar_lea.sflag [#allocation6], 1
    %226 = vsyncpa %s225, 1

</llo_original>
